<compile_context>
chip_gen: v7x
topology: tpu7x:2x2x1
jax: 0.10.0
libtpu: 0.0.40
codegen_flags: <defaults>
</compile_context>

<pallas_src>
import functools

import jax
import jax.numpy as jnp
from jax import lax
from jax.experimental import pallas as pl
from jax.experimental.pallas import tpu as pltpu


def _round_up(a, m):
    return (a + m - 1) // m * m


def _conv_band_kernel(x_ref, w_ref, o_ref, *, TH, K):
    """One (batch, row-tile) per grid step.

    x_ref: (Hp_total, WpCi_pad)    lane-packed padded image for this batch
                                   (block index depends only on b, so it is not
                                   re-fetched across row tiles)
    w_ref: (K*WpCi_pad, W*C_out)   folded banded weight (+ bias row)
    o_ref: (TH, W*C_out)           lane-dense output row tile
    """
    h0 = pl.multiple_of(pl.program_id(1) * TH, TH)
    # Single contiguous halo-slab load (v1 re-read K overlapping, unaligned
    # windows from the ref per tile).
    slab = x_ref[pl.ds(h0, TH + K - 1), :]
    # Fold the K vertical taps into the contraction axis; each tap chunk is a
    # 128-lane multiple, so this concat is layout-cheap and aligned.
    lhs = jnp.concatenate([slab[kh:kh + TH, :] for kh in range(K)], axis=-1)
    # One deep MXU contraction; the reserved ones-lane adds the bias in the MXU.
    acc = jnp.dot(lhs, w_ref[...], preferred_element_type=jnp.float32)
    o_ref[...] = acc.astype(o_ref.dtype)        # normalization = nn.Identity


def build_conv2d_normalize_band(weight, bias, W, *, kernel_size=3,
                                compute_dtype=jnp.float32):
    """Folded banded ("Toeplitz") weight of shape (K*WpCi_pad, W*C_out).

    Row index kh*WpCi_pad + w_in*C_in + ci holds weight[co, ci, kh, w_in - w]
    (zero outside the band / in lane padding); row WpCi (tap 0's ones-lane)
    carries the W-tiled bias.  Depends only on (weight, bias, W): precompute it
    once per layer and pass it to conv2d_normalize to keep it out of the hot path.
    """
    C_out, C_in, K, K2 = weight.shape
    assert K == kernel_size and K2 == K
    pad = (K - 1) // 2
    Wp = W + 2 * pad
    WpCi = Wp * C_in
    WpCi_pad = _round_up(WpCi + 1, 128)          # +1 reserves the ones/bias lane

    w_hwio = jnp.transpose(weight, (2, 3, 1, 0)).astype(jnp.float32)  # (K,K,Ci,Co)
    w_out = jnp.arange(W)
    w_in = jnp.arange(Wp)
    kw_off = w_in[None, :] - w_out[:, None]                           # (W, Wp)
    valid = (kw_off >= 0) & (kw_off < K)
    kw_idx = jnp.clip(kw_off, 0, K - 1)
    band = w_hwio[:, kw_idx]                                          # (K,W,Wp,Ci,Co)
    band = jnp.where(valid[None, :, :, None, None], band, 0.0)
    # -> (K, Wp, Ci, W, Co) -> (K, Wp*Ci, W*Co)
    band = jnp.transpose(band, (0, 2, 3, 1, 4)).reshape(K, WpCi, W * C_out)
    band = jnp.pad(band, ((0, 0), (0, WpCi_pad - WpCi), (0, 0)))
    # Bias rides in the reserved ones-lane of tap 0 (other taps stay zero there).
    band = band.at[0, WpCi, :].set(jnp.tile(bias.astype(jnp.float32), W))
    return band.reshape(K * WpCi_pad, W * C_out).astype(compute_dtype)


def conv2d_normalize(x, weight, bias, *, kernel_size=3, stride=1, groups=1,
                     tile_h=128, compute_dtype=jnp.float32,
                     data_format="NCHW", w_band=None):
    """Pallas implementation of Conv2DNormalize.forward (Identity normalization).

    x:      (B, C_in, H, W)  [NCHW, PyTorch layout] or (B, H, W, C_in) [NHWC]
    weight: (C_out, C_in, K, K) float32 (PyTorch Conv2d layout, groups=1)
    bias:   (C_out,) float32
    compute_dtype=jnp.bfloat16 is the recommended production setting (halves
    HBM bytes, doubles MXU rate; accumulation stays f32); f32 is the default so
    default numerics match the PyTorch module.
    """
    assert stride == 1 and groups == 1, "only stride=1, groups=1 implemented"
    assert kernel_size % 2 == 1, "only odd kernel sizes implemented"

    if data_format == "NCHW":
        x_nhwc = jnp.transpose(x, (0, 2, 3, 1))
    else:  # "NHWC" fast path skips two full-array HBM transpose passes
        x_nhwc = x
    B, H, W, C_in = x_nhwc.shape
    C_out, C_in_w, K, K2 = weight.shape
    assert K == kernel_size and K2 == K and C_in_w == C_in
    pad = (K - 1) // 2
    Wp = W + 2 * pad
    WpCi = Wp * C_in
    WpCi_pad = _round_up(WpCi + 1, 128)
    WCo = W * C_out
    out_dtype = x.dtype

    # ---- row-tile selection: big tiles, (8,128)/bf16-packing aligned, pad H
    #      instead of the old TH=H fallback, keep >=2 grid steps for v7x ----
    sub = 8 * (4 // jnp.dtype(compute_dtype).itemsize)      # 8 (f32) / 16 (bf16)
    TH = max(sub, min(_round_up(tile_h, sub), _round_up(H, sub)))
    if B == 1 and TH >= _round_up(H, sub) and H > sub:
        TH = _round_up(-(-H // 2), sub)   # split rows so both v7x TCs get a tile
    H_pad = _round_up(H, TH)
    Hp_total = H_pad + 2 * pad

    # ---- layout glue (plain JAX): lane-packed, zero-padded image ----
    x_padded = jnp.pad(
        x_nhwc, ((0, 0), (pad, pad + (H_pad - H)), (pad, pad), (0, 0)))
    x_packed = x_padded.reshape(B, Hp_total, WpCi)
    x_packed = jnp.concatenate(
        [x_packed,
         jnp.ones((B, Hp_total, 1), x_packed.dtype),     # ones-lane (bias via MXU)
         jnp.zeros((B, Hp_total, WpCi_pad - WpCi - 1), x_packed.dtype)],
        axis=-1).astype(compute_dtype)

    if w_band is None:   # precompute & pass this in to hoist it out of the hot path
        w_band = build_conv2d_normalize_band(
            weight, bias, W, kernel_size=K, compute_dtype=compute_dtype)

    # ---- VMEM budget / cost hints (re-derive per generation; v7x caps at 64 MiB) --
    isz = jnp.dtype(compute_dtype).itemsize
    osz = jnp.dtype(out_dtype).itemsize
    block_bytes = (Hp_total * WpCi_pad * isz            # per-batch image block
                   + K * WpCi_pad * WCo * isz           # constant folded band
                   + TH * WCo * osz)                    # output row tile
    working_bytes = (2 * K + 1) * TH * WpCi_pad * 4     # slab + folded lhs + f32 acc
    vmem_limit = int(min(64 * 2 ** 20,
                         max(16 * 2 ** 20, 2 * (2 * block_bytes + working_bytes))))

    flops = 2 * B * H_pad * (K * WpCi_pad) * WCo        # true banded-matmul FLOPs
    bytes_accessed = (B * Hp_total * WpCi_pad * isz
                      + K * WpCi_pad * WCo * isz
                      + B * H_pad * WCo * osz)

    kernel = functools.partial(_conv_band_kernel, TH=TH, K=K)

    out_packed = pl.pallas_call(
        kernel,
        out_shape=jax.ShapeDtypeStruct((B, H_pad, WCo), out_dtype),
        grid_spec=pltpu.PrefetchScalarGridSpec(
            num_scalar_prefetch=0,
            grid=(B, H_pad // TH),
            in_specs=[
                # Full padded image per batch; revisited (not re-DMA'd) across
                # row tiles.  TODO(synk): halo-tile rows for very large images.
                pl.BlockSpec((None, Hp_total, WpCi_pad), lambda b, h: (b, 0, 0)),
                # Constant folded band (+ bias row); constant index_map.
                pl.BlockSpec((K * WpCi_pad, WCo), lambda b, h: (0, 0)),
            ],
            out_specs=pl.BlockSpec((None, TH, WCo), lambda b, h: (b, h, 0)),
        ),
        compiler_params=pltpu.CompilerParams(
            dimension_semantics=("parallel", "parallel"),
            vmem_limit_bytes=vmem_limit,
        ),
        cost_estimate=pl.CostEstimate(
            flops=flops, transcendentals=0, bytes_accessed=bytes_accessed),
    )(x_packed, w_band)

    out_nhwc = out_packed[:, :H, :].reshape(B, H, W, C_out)
    if data_format == "NCHW":
        return jnp.transpose(out_nhwc, (0, 3, 1, 2))
    return out_nhwc


def _reference(x_nchw, weight, bias, pad):
    # Pure-JAX reference (XLA conv) for correctness check.
    y = lax.conv_general_dilated(
        x_nchw, weight, window_strides=(1, 1),
        padding=((pad, pad), (pad, pad)),
        dimension_numbers=("NCHW", "OIHW", "NCHW"),
    )
    return y + bias[None, :, None, None]


if __name__ == "__main__":
    # Small shapes consistent with the module: B=2, C_in=4, C_out=8, H=W=16, K=3.
    B, C_in, C_out, H, W, K = 2, 4, 8, 16, 16, 3

    key = jax.random.PRNGKey(0)
    kx, kw, kb = jax.random.split(key, 3)
    x = jax.random.normal(kx, (B, C_in, H, W), dtype=jnp.float32)
    # Deterministic synthetic parameters (shapes match nn.Conv2d(C_in, C_out, 3)).
    weight = jax.random.normal(kw, (C_out, C_in, K, K), dtype=jnp.float32) * 0.1
    bias = jax.random.normal(kb, (C_out,), dtype=jnp.float32) * 0.1

    y_ref = _reference(x, weight, bias, (K - 1) // 2)

    # Exact-semantics path (matches the PyTorch module's f32 forward).
    y_f32 = jax.block_until_ready(
        conv2d_normalize(x, weight, bias, kernel_size=K,
                         compute_dtype=jnp.float32))
    assert y_f32.shape == (B, C_out, H, W)
    assert jnp.allclose(y_f32, y_ref, atol=1e-4, rtol=1e-4)

    # Recommended production path: bf16 operands, f32 MXU accumulation.
    y_bf16 = jax.block_until_ready(
        conv2d_normalize(x, weight, bias, kernel_size=K,
                         compute_dtype=jnp.bfloat16))
    assert y_bf16.shape == (B, C_out, H, W)
    assert jnp.allclose(y_bf16, y_ref, atol=5e-2, rtol=5e-2)

    print("KERNEL_OK")
</pallas_src>

<mosaic_0001>
module attributes {stable_mosaic.version = 11 : i64} {
  func.func @_conv_band_kernel(%arg0: i32, %arg1: i32, %arg2: memref<1x18x128xf32, #tpu.memory_space<vmem>>, %arg3: memref<384x128xf32, #tpu.memory_space<vmem>>, %arg4: memref<1x16x128xf32, #tpu.memory_space<vmem>>) attributes {dimension_semantics = [#tpu.dimension_semantics<parallel>, #tpu.dimension_semantics<parallel>], iteration_bounds = array<i64: 2, 1>, scalar_prefetch = 0 : i64, scratch_operands = 0 : i64, tpu.core_type = #tpu.core_type<tc>, window_params = [{transform_indices = @transform_0, window_bounds = array<i64: 1, 18, 128>}, {pipeline_mode = #tpu.pipeline_mode<synchronous>, transform_indices = @transform_1, window_bounds = array<i64: 384, 128>}, {transform_indices = @transform_2, window_bounds = array<i64: 1, 16, 128>}]} {
    %c16_i32 = arith.constant 16 : i32
    %0 = arith.muli %arg1, %c16_i32 : i32
    %1 = tpu.assume_multiple %0, 16 : i32
    %c0 = arith.constant 0 : index
    %2 = arith.index_cast %1 : i32 to index
    %c0_0 = arith.constant 0 : index
    %3 = vector.load %arg2[%c0, %2, %c0_0] : memref<1x18x128xf32, #tpu.memory_space<vmem>>, vector<1x18x128xf32>
    %4 = vector.shape_cast %3 : vector<1x18x128xf32> to vector<18x128xf32>
    %5 = vector.extract_strided_slice %4 {offsets = [0, 0], sizes = [16, 128], strides = [1, 1]} : vector<18x128xf32> to vector<16x128xf32>
    %6 = vector.extract_strided_slice %4 {offsets = [1, 0], sizes = [16, 128], strides = [1, 1]} : vector<18x128xf32> to vector<16x128xf32>
    %7 = vector.extract_strided_slice %4 {offsets = [2, 0], sizes = [16, 128], strides = [1, 1]} : vector<18x128xf32> to vector<16x128xf32>
    %8 = tpu.concatenate %5, %6, %7 in 1 : vector<16x128xf32>, vector<16x128xf32>, vector<16x128xf32> -> vector<16x384xf32>
    %c0_1 = arith.constant 0 : index
    %c0_2 = arith.constant 0 : index
    %9 = vector.load %arg3[%c0_1, %c0_2] : memref<384x128xf32, #tpu.memory_space<vmem>>, vector<384x128xf32>
    %cst = arith.constant dense<0.000000e+00> : vector<16x128xf32>
    %10 = tpu.matmul %8, %9, %cst {dimension_numbers = #tpu.dot_dimension_numbers<[1], [0], [0], [1], [0, 0, 1, 1], [], []>} : vector<16x384xf32>, vector<384x128xf32>, vector<16x128xf32> -> vector<16x128xf32>
    %c0_3 = arith.constant 0 : index
    %c0_4 = arith.constant 0 : index
    %c0_5 = arith.constant 0 : index
    %11 = vector.load %arg4[%c0_3, %c0_4, %c0_5] : memref<1x16x128xf32, #tpu.memory_space<vmem>>, vector<1x16x128xf32>
    %12 = vector.shape_cast %11 : vector<1x16x128xf32> to vector<16x128xf32>
    %13 = vector.shape_cast %10 : vector<16x128xf32> to vector<1x16x128xf32>
    tpu.vector_store %arg4[%c0_3, %c0_4, %c0_5], %13 {strides = array<i32>} : memref<1x16x128xf32, #tpu.memory_space<vmem>>, vector<1x16x128xf32>,
    return
  }
  func.func @transform_0(%arg0: i32, %arg1: i32) -> (i32, i32, i32) {
    %c0_i32 = arith.constant 0 : i32
    %c0_i32_0 = arith.constant 0 : i32
    %c0_i32_1 = arith.constant 0 : i32
    return %arg0, %c0_i32, %c0_i32_0 : i32, i32, i32
  }
  func.func @transform_1(%arg0: i32, %arg1: i32) -> (i32, i32) {
    %c0_i32 = arith.constant 0 : i32
    %c0_i32_0 = arith.constant 0 : i32
    %c0_i32_1 = arith.constant 0 : i32
    return %c0_i32, %c0_i32_0 : i32, i32
  }
  func.func @transform_2(%arg0: i32, %arg1: i32) -> (i32, i32, i32) {
    %c0_i32 = arith.constant 0 : i32
    %c0_i32_0 = arith.constant 0 : i32
    return %arg0, %arg1, %c0_i32 : i32, i32, i32
  }
}

</mosaic_0001>

<llo_original>
// kernel: tpu_custom_call.1
$region0: #{tpu_custom_call.1}
  #allocation0 [shape = 'u32[]', space=smem, size = 0x4, offset = 0x4, fixed_abs, tag = 'smem constant byte address 0x4 - core index']
  #allocation1 [shape = 'u32[144,128]{1,0:T(1,128)}', space=vmem, size = 0x12000, scoped, tag = 'internal scratch']
  %s0 = inlined_call_operand.vmem [shape: f32[2,18,128], index: 0, kind: input, shape index: {}]
  %s1 = inlined_call_operand.hbm [shape: f32[384,128], index: 1, kind: input, shape index: {}]
  %s2 = inlined_call_operand.hbm [shape: f32[2,16,128], index: 2, kind: output, shape index: {}]
  %s3 = sld [smem:[#allocation0]]
  $region45: #{tpu_custom_call.1} parent=0
    _
  %s5 = ssub.s32 1, %s3
  %s6 = scalar_select 0, %s5, %s3
  $region1: #{tpu_custom_call.1} parent=0
    #allocation2 [shape = 'u8[196608]{0}', space=vmem, size = 0x30000, scoped, tag = 'input window, operand 1, single buffered']
    #allocation3 [shape = 's32[2]{0}', space=sflag, size = 0x8, scoped, tag = 'scoped memory for tpu_custom_call.1']
    #allocation4 [shape = 's32[2]{0}', space=sflag, size = 0x8, scoped, tag = 'scoped memory for tpu_custom_call.1']
    #allocation5 [shape = 'u8[16384]{0}', space=vmem, size = 0x4000, scoped, tag = 'output window, operand 0']
    %7 = vsyncpa [#allocation3], 0
    %8 = vsyncpa [#allocation4], 0
    %s9 = scalar_lea.sflag [#allocation4], 1
    %10 = vsyncpa %s9, 0
    loop: start=0, step=1, limit=4
    $region2: #{tpu_custom_call.1} parent=1 // loop_pre_header
      _
    $region3: #{tpu_custom_call.1} parent=1 // loop_header
      %s12 = sphi 0, %s16
      %p13 = scmp.ge.s32.totalorder %s12, 4
      %s19 = sphi 0, %s31
      %s20 = sphi 0, %s27
      %s21 = sphi 0, %s19
      %s22 = sphi 0, %s20
      %s23 = sphi 0, %s21
      %s24 = sphi 0, %s22
      %s34 = sphi 0, %s36
      %s37 = sphi 0, %s34
      %s38 = sphi 0, %s37
      %s54 = sphi 0, %s38
      %s58 = sphi 0, %s58
      %s60 = sphi 0, %s58
      %s61 = sphi 0, %s60
      %s75 = sphi 0, %s61
      %s83 = sphi 0, %s85
      %s86 = sphi 0, %s83
      %s87 = sphi 0, %s86
      %s103 = sphi 0, %s87
    $region4: #{tpu_custom_call.1} parent=1 // loop_header_branch
      %15 = sbr.rel (%p13) target = $region8
    $region5: #{tpu_custom_call.1} parent=1 // loop_body
      %s17 = ssub.s32 %s12, 1
      %s18 = ssub.s32 %s12, 2
      %s25 = sadd.s32 1, %s20
      %p26 = scmp.ge.s32.totalorder %s25, 1
      %s27 = scalar_select %p26, 0, %s25
      %s28 = sadd.s32 1, %s19
      %s29 = scalar_select %p26, %s28, %s19
      %p30 = scmp.ge.s32.totalorder %s29, 2
      %s31 = scalar_select %p30, 0, %s29
      %s32 = ssub.s32 %s19, %s31
      %p33 = scmp.eq.s32.totalorder %s32, 0
      %s35 = sadd.s32 %s34, 1
      %s36 = scalar_select %p33, %s34, %s35
      %p39 = pneg %p33
      %p40 = scmp.eq.s32.totalorder %s12, 1
      %p41 = por %p39, %p40
      %p42 = scmp.ne.s32.totalorder %s34, %s37
      %p43 = scmp.eq.s32.totalorder %s12, 0
      %p44 = por %p42, %p43
      %p45 = scmp.ne.s32.totalorder %s34, %s37
      %p46 = scmp.eq.s32.totalorder %s17, 1
      %p47 = por %p45, %p46
      %p48 = scmp.ne.s32.totalorder %s37, %s38
      %p49 = scmp.eq.s32.totalorder %s17, 0
      %p50 = por %p48, %p49
      %p51 = scmp.ne.s32.totalorder %s37, %s38
      %p52 = scmp.eq.s32.totalorder %s18, 1
      %p53 = por %p51, %p52
      %p55 = scmp.ne.s32.totalorder %s38, %s54
      %p56 = scmp.eq.s32.totalorder %s18, 0
      %p57 = por %p55, %p56
      %s59 = sadd.s32 %s58, 1
      %p62 = scmp.eq.s32.totalorder %s12, 1
      %p63 = scmp.ne.s32.totalorder %s58, %s60
      %p64 = scmp.eq.s32.totalorder %s12, 0
      %p65 = por %p63, %p64
      %p66 = scmp.ne.s32.totalorder %s58, %s60
      %p67 = scmp.eq.s32.totalorder %s17, 1
      %p68 = por %p66, %p67
      %p69 = scmp.ne.s32.totalorder %s60, %s61
      %p70 = scmp.eq.s32.totalorder %s17, 0
      %p71 = por %p69, %p70
      %p72 = scmp.ne.s32.totalorder %s60, %s61
      %p73 = scmp.eq.s32.totalorder %s18, 1
      %p74 = por %p72, %p73
      %p76 = scmp.ne.s32.totalorder %s61, %s75
      %p77 = scmp.eq.s32.totalorder %s18, 0
      %p78 = por %p76, %p77
      %s79 = ssub.s32 %s19, %s31
      %s80 = ssub.s32 %s20, %s27
      %s81 = sor.u32 %s79, %s80
      %p82 = scmp.eq.s32.totalorder %s81, 0
      %s84 = sadd.s32 %s83, 1
      %s85 = scalar_select %p82, %s83, %s84
      %p88 = pneg %p82
      %p89 = scmp.eq.s32.totalorder %s12, 1
      %p90 = por %p88, %p89
      %p91 = scmp.ne.s32.totalorder %s83, %s86
      %p92 = scmp.eq.s32.totalorder %s12, 0
      %p93 = por %p91, %p92
      %p94 = scmp.ne.s32.totalorder %s83, %s86
      %p95 = scmp.eq.s32.totalorder %s17, 1
      %p96 = por %p94, %p95
      %p97 = scmp.ne.s32.totalorder %s86, %s87
      %p98 = scmp.eq.s32.totalorder %s17, 0
      %p99 = por %p97, %p98
      %p100 = scmp.ne.s32.totalorder %s86, %s87
      %p101 = scmp.eq.s32.totalorder %s18, 1
      %p102 = por %p100, %p101
      %p104 = scmp.ne.s32.totalorder %s87, %s103
      %p105 = scmp.eq.s32.totalorder %s18, 0
      %p106 = por %p104, %p105
      %p107 = scmp.le.s32.totalorder 1, %s12
      %p108 = scmp.lt.s32.totalorder %s12, 3
      %p109 = pnand %p107, %p108
      %p110 = pneg %p109
      // Predicated region
      $region9: #{tpu_custom_call.1} parent=5 // pred_check
        _
      $region10: #{tpu_custom_call.1} parent=5 // pred_check_branch
        %112 = sbr.rel (%p109) target = $region12
      $region11: #{tpu_custom_call.1} parent=5 // pred_region
        %s113 = ssub.s32 %s12, 1
        // Predicated region
        $region13: #{tpu_custom_call.1} parent=11 // pred_check
          %p114 = pneg %p71
        $region14: #{tpu_custom_call.1} parent=11 // pred_check_branch
          %116 = sbr.rel (%p114) target = $region16
        $region15: #{tpu_custom_call.1} parent=11 // pred_region
          %s118 = ssub.s32 6144, 6144
          %119 = vsyncadd [#allocation3], %s118
          %s120 = sshll.u32 [#allocation2], 4
          %s121 = int_to_ptr.vmem [resolvable:$true] %s120
          %126 = dma.hbm_to_vmem [thread:$0]  %s1, 6144, %s121, [#allocation3], 128, 128, 8
        $region16: #{tpu_custom_call.1} parent=11 // pred_fallthru
          _
      $region12: #{tpu_custom_call.1} parent=5 // pred_fallthru
        _
      %p127 = scmp.lt.s32.totalorder %s12, 2
      // Predicated region
      $region17: #{tpu_custom_call.1} parent=5 // pred_check
        %p128 = pneg %p127
      $region18: #{tpu_custom_call.1} parent=5 // pred_check_branch
        %130 = sbr.rel (%p128) target = $region20
      $region19: #{tpu_custom_call.1} parent=5 // pred_region
        // Predicated region
        $region21: #{tpu_custom_call.1} parent=19 // pred_check
          %p131 = pneg %p44
        $region22: #{tpu_custom_call.1} parent=19 // pred_check_branch
          %133 = sbr.rel (%p131) target = $region24
        $region23: #{tpu_custom_call.1} parent=19 // pred_region
          %p134 = scmp.lt.s32.totalorder %s19, 1
          %s135 = scalar_select %p134, %s19, 1
          %s136 = smul.addr %s135, 3
          %s137 = smul.addr %s136, 8
          %s138 = scalar_lea.vmem %s0, %s137
        $region24: #{tpu_custom_call.1} parent=19 // pred_fallthru
          _
      $region20: #{tpu_custom_call.1} parent=5 // pred_fallthru
        _
      %p139 = scmp.le.s32.totalorder 1, %s12
      %p140 = scmp.lt.s32.totalorder %s12, 3
      %p141 = pnand %p139, %p140
      %p142 = pneg %p141
      // Predicated region
      $region25: #{tpu_custom_call.1} parent=5 // pred_check
        _
      $region26: #{tpu_custom_call.1} parent=5 // pred_check_branch
        %144 = sbr.rel (%p141) target = $region28
      $region27: #{tpu_custom_call.1} parent=5 // pred_region
        %s145 = ssub.s32 %s12, 1
        // Predicated region
        $region29: #{tpu_custom_call.1} parent=27 // pred_check
          %p146 = pneg %p71
        $region30: #{tpu_custom_call.1} parent=27 // pred_check_branch
          %148 = sbr.rel (%p146) target = $region32
        $region31: #{tpu_custom_call.1} parent=27 // pred_region
          %149 = dma.done [#allocation3], 6144
        $region32: #{tpu_custom_call.1} parent=27 // pred_fallthru
          _
        %p150 = scmp.lt.s32.totalorder %s21, 1
        %s151 = scalar_select %p150, %s21, 1
        %s152 = smul.addr %s151, 3
        %s153 = smul.addr %s152, 8
        %s154 = scalar_lea.vmem %s0, %s153
        %p155 = pneg %p50
        %p156 = pneg %p47
        %p157 = pneg %p71
        %p158 = pneg %p68
        %p159 = pneg %p99
        %p160 = pneg %p96
        %s161 = sand.u32 %s86, 1
        %s162 = scalar_lea.sflag [#allocation4], %s161
        %s163 = sand.u32 %s86, 1
        %s164 = smul.addr %s163, 16
        %s165 = scalar_lea.vmem [#allocation5], %s164
        %p166 = scmp.lt.s32.totalorder %s21, 1
        %s167 = scalar_select %p166, %s21, 1
        %s168 = smul.addr %s167, 3
        %s169 = smul.addr %s168, 8
        %s170 = scalar_lea.vmem %s0, %s169
        %s171 = smul.u32 2, %s22
        %s172 = smul.u32 %s22, 16
        %s173 = scalar_lea.vmem %s170, %s172
        %v174 = vld [vmem:[%s173] sm:$0xff]
        %v175 = vld [vmem:[%s173 + $0x8] sm:$0xff]
        %v176 = vld [vmem:[%s173 + $0x10] sm:$0x3]
        %vm180 = vcmask 1046528
        %v181 = vrot.slane %v174, 1
        %v182 = vrot.slane %v175, 1
        %v183 = vsel %vm180, %v181, %v182
        %v184 = vrot.slane %v176, 1
        %v185 = vsel %vm180, %v182, %v184
        %vm188 = vcmask 1045504
        %v189 = vrot.slane %v174, 2
        %v190 = vrot.slane %v175, 2
        %v191 = vsel %vm188, %v189, %v190
        %v192 = vrot.slane %v176, 2
        %v193 = vsel %vm188, %v190, %v192
        %v196 = vld [vmem:[#allocation2] sm:$0xff]
        %v197 = vld [vmem:[#allocation2 + $0x8] sm:$0xff]
        %v198 = vld [vmem:[#allocation2 + $0x10] sm:$0xff]
        %v199 = vld [vmem:[#allocation2 + $0x18] sm:$0xff]
        %v200 = vld [vmem:[#allocation2 + $0x20] sm:$0xff]
        %v201 = vld [vmem:[#allocation2 + $0x28] sm:$0xff]
        %v202 = vld [vmem:[#allocation2 + $0x30] sm:$0xff]
        %v203 = vld [vmem:[#allocation2 + $0x38] sm:$0xff]
        %v204 = vld [vmem:[#allocation2 + $0x40] sm:$0xff]
        %v205 = vld [vmem:[#allocation2 + $0x48] sm:$0xff]
        %v206 = vld [vmem:[#allocation2 + $0x50] sm:$0xff]
        %v207 = vld [vmem:[#allocation2 + $0x58] sm:$0xff]
        %v208 = vld [vmem:[#allocation2 + $0x60] sm:$0xff]
        %v209 = vld [vmem:[#allocation2 + $0x68] sm:$0xff]
        %v210 = vld [vmem:[#allocation2 + $0x70] sm:$0xff]
        %v211 = vld [vmem:[#allocation2 + $0x78] sm:$0xff]
        %v212 = vld [vmem:[#allocation2 + $0x80] sm:$0xff]
        %v213 = vld [vmem:[#allocation2 + $0x88] sm:$0xff]
        %v214 = vld [vmem:[#allocation2 + $0x90] sm:$0xff]
        %v215 = vld [vmem:[#allocation2 + $0x98] sm:$0xff]
        %v216 = vld [vmem:[#allocation2 + $0xa0] sm:$0xff]
        %v217 = vld [vmem:[#allocation2 + $0xa8] sm:$0xff]
        %v218 = vld [vmem:[#allocation2 + $0xb0] sm:$0xff]
        %v219 = vld [vmem:[#allocation2 + $0xb8] sm:$0xff]
        %v220 = vld [vmem:[#allocation2 + $0xc0] sm:$0xff]
        %v221 = vld [vmem:[#allocation2 + $0xc8] sm:$0xff]
        %v222 = vld [vmem:[#allocation2 + $0xd0] sm:$0xff]
        %v223 = vld [vmem:[#allocation2 + $0xd8] sm:$0xff]
        %v224 = vld [vmem:[#allocation2 + $0xe0] sm:$0xff]
        %v225 = vld [vmem:[#allocation2 + $0xe8] sm:$0xff]
        %v226 = vld [vmem:[#allocation2 + $0xf0] sm:$0xff]
        %v227 = vld [vmem:[#allocation2 + $0xf8] sm:$0xff]
        %v228 = vld [vmem:[#allocation2 + $0x100] sm:$0xff]
        %v229 = vld [vmem:[#allocation2 + $0x108] sm:$0xff]
        %v230 = vld [vmem:[#allocation2 + $0x110] sm:$0xff]
        %v231 = vld [vmem:[#allocation2 + $0x118] sm:$0xff]
        %v232 = vld [vmem:[#allocation2 + $0x120] sm:$0xff]
        %v233 = vld [vmem:[#allocation2 + $0x128] sm:$0xff]
        %v234 = vld [vmem:[#allocation2 + $0x130] sm:$0xff]
        %v235 = vld [vmem:[#allocation2 + $0x138] sm:$0xff]
        %v236 = vld [vmem:[#allocation2 + $0x140] sm:$0xff]
        %v237 = vld [vmem:[#allocation2 + $0x148] sm:$0xff]
        %v238 = vld [vmem:[#allocation2 + $0x150] sm:$0xff]
        %v239 = vld [vmem:[#allocation2 + $0x158] sm:$0xff]
        %v240 = vld [vmem:[#allocation2 + $0x160] sm:$0xff]
        %v241 = vld [vmem:[#allocation2 + $0x168] sm:$0xff]
        %v242 = vld [vmem:[#allocation2 + $0x170] sm:$0xff]
        %v243 = vld [vmem:[#allocation2 + $0x178] sm:$0xff]
        %244 = vmatprep.subr.mxu0 0.0
        %245 = vmatpush1.msra.mxu0 %v196
        %246 = vmatprep.subr.mxu0 0.0
        %247 = vmatpush1.msra.mxu0 %v197
        %248 = vmatprep.subr.mxu0 0.0
        %249 = vmatpush1.msra.mxu0 %v198
        %250 = vmatprep.subr.mxu0 0.0
        %251 = vmatpush1.msra.mxu0 %v199
        %252 = vmatprep.subr.mxu0 0.0
        %253 = vmatpush1.msra.mxu0 %v200
        %254 = vmatprep.subr.mxu0 0.0
        %255 = vmatpush1.msra.mxu0 %v201
        %256 = vmatprep.subr.mxu0 0.0
        %257 = vmatpush1.msra.mxu0 %v202
        %258 = vmatprep.subr.mxu0 0.0
        %259 = vmatpush1.msra.mxu0 %v203
        %260 = vmatprep.subr.mxu0 0.0
        %261 = vmatpush1.msra.mxu0 %v204
        %262 = vmatprep.subr.mxu0 0.0
        %263 = vmatpush1.msra.mxu0 %v205
        %264 = vmatprep.subr.mxu0 0.0
        %265 = vmatpush1.msra.mxu0 %v206
        %266 = vmatprep.subr.mxu0 0.0
        %267 = vmatpush1.msra.mxu0 %v207
        %268 = vmatprep.subr.mxu0 0.0
        %269 = vmatpush1.msra.mxu0 %v208
        %270 = vmatprep.subr.mxu0 0.0
        %271 = vmatpush1.msra.mxu0 %v209
        %272 = vmatprep.subr.mxu0 0.0
        %273 = vmatpush1.msra.mxu0 %v210
        %274 = vmatprep.subr.mxu0 0.0
        %275 = vmatpush1.msra.mxu0 %v211
        %276 = vmatprep.subr.mxu0 0.0
        %277 = vmatpush1.msra.mxu0 %v212
        %278 = vmatprep.subr.mxu0 0.0
        %279 = vmatpush1.msra.mxu0 %v213
        %280 = vmatprep.subr.mxu0 0.0
        %281 = vmatpush1.msra.mxu0 %v214
        %282 = vmatprep.subr.mxu0 0.0
        %283 = vmatpush1.msra.mxu0 %v215
        %284 = vmatprep.subr.mxu0 0.0
        %285 = vmatpush1.msra.mxu0 %v216
        %286 = vmatprep.subr.mxu0 0.0
        %287 = vmatpush1.msra.mxu0 %v217
        %288 = vmatprep.subr.mxu0 0.0
        %289 = vmatpush1.msra.mxu0 %v218
        %290 = vmatprep.subr.mxu0 0.0
        %291 = vmatpush1.msra.mxu0 %v219
        %292 = vmatprep.subr.mxu0 0.0
        %293 = vmatpush1.msra.mxu0 %v220
        %294 = vmatprep.subr.mxu0 0.0
        %295 = vmatpush1.msra.mxu0 %v221
        %296 = vmatprep.subr.mxu0 0.0
        %297 = vmatpush1.msra.mxu0 %v222
        %298 = vmatprep.subr.mxu0 0.0
        %299 = vmatpush1.msra.mxu0 %v223
        %300 = vmatprep.subr.mxu0 0.0
        %301 = vmatpush1.msra.mxu0 %v224
        %302 = vmatprep.subr.mxu0 0.0
        %303 = vmatpush1.msra.mxu0 %v225
        %304 = vmatprep.subr.mxu0 0.0
        %305 = vmatpush1.msra.mxu0 %v226
        %306 = vmatprep.subr.mxu0 0.0
        %307 = vmatpush1.msra.mxu0 %v227
        %308 = vmatprep.mubr.f32.mxu0 %v183
        %309 = vmatmul.mubr.f32.gmra.mrb[0].mxu0 %v174
        %v310 = vpop.f32.mrb[0].mxu0
        %v311 = vadd.f32 0.0, %v310
        %v312 = vpop.f32.mrb[0].mxu0
        %313 = vmatprep.mubr.f32.mxu0 %v185
        %314 = vmatmul.mubr.f32.gmra.mrb[0].mxu0 %v175
        %v315 = vpop.f32.mrb[0].mxu0
        %v316 = vadd.f32 0.0, %v315
        %v317 = vpop.f32.mrb[0].mxu0
        %318 = vdwg.mxu0
        %319 = vmatprep.subr.mxu0 0.0
        %320 = vmatpush1.msra.mxu0 %v228
        %321 = vmatprep.subr.mxu0 0.0
        %322 = vmatpush1.msra.mxu0 %v229
        %323 = vmatprep.subr.mxu0 0.0
        %324 = vmatpush1.msra.mxu0 %v230
        %325 = vmatprep.subr.mxu0 0.0
        %326 = vmatpush1.msra.mxu0 %v231
        %327 = vmatprep.subr.mxu0 0.0
        %328 = vmatpush1.msra.mxu0 %v232
        %329 = vmatprep.subr.mxu0 0.0
        %330 = vmatpush1.msra.mxu0 %v233
        %331 = vmatprep.subr.mxu0 0.0
        %332 = vmatpush1.msra.mxu0 %v234
        %333 = vmatprep.subr.mxu0 0.0
        %334 = vmatpush1.msra.mxu0 %v235
        %335 = vmatprep.subr.mxu0 0.0
        %336 = vmatpush1.msra.mxu0 %v236
        %337 = vmatprep.subr.mxu0 0.0
        %338 = vmatpush1.msra.mxu0 %v237
        %339 = vmatprep.subr.mxu0 0.0
        %340 = vmatpush1.msra.mxu0 %v238
        %341 = vmatprep.subr.mxu0 0.0
        %342 = vmatpush1.msra.mxu0 %v239
        %343 = vmatprep.subr.mxu0 0.0
        %344 = vmatpush1.msra.mxu0 %v240
        %345 = vmatprep.subr.mxu0 0.0
        %346 = vmatpush1.msra.mxu0 %v241
        %347 = vmatprep.subr.mxu0 0.0
        %348 = vmatpush1.msra.mxu0 %v242
        %349 = vmatprep.subr.mxu0 0.0
        %350 = vmatpush1.msra.mxu0 %v243
        %351 = vmatprep.subr.mxu0 0.0
        %352 = vmatpush1.msra.mxu0 0.0
        %353 = vmatprep.subr.mxu0 0.0
        %354 = vmatpush1.msra.mxu0 0.0
        %355 = vmatprep.subr.mxu0 0.0
        %356 = vmatpush1.msra.mxu0 0.0
        %357 = vmatprep.subr.mxu0 0.0
        %358 = vmatpush1.msra.mxu0 0.0
        %359 = vmatprep.subr.mxu0 0.0
        %360 = vmatpush1.msra.mxu0 0.0
        %361 = vmatprep.subr.mxu0 0.0
        %362 = vmatpush1.msra.mxu0 0.0
        %363 = vmatprep.subr.mxu0 0.0
        %364 = vmatpush1.msra.mxu0 0.0
        %365 = vmatprep.subr.mxu0 0.0
        %366 = vmatpush1.msra.mxu0 0.0
        %367 = vmatprep.subr.mxu0 0.0
        %368 = vmatpush1.msra.mxu0 0.0
        %369 = vmatprep.subr.mxu0 0.0
        %370 = vmatpush1.msra.mxu0 0.0
        %371 = vmatprep.subr.mxu0 0.0
        %372 = vmatpush1.msra.mxu0 0.0
        %373 = vmatprep.subr.mxu0 0.0
        %374 = vmatpush1.msra.mxu0 0.0
        %375 = vmatprep.subr.mxu0 0.0
        %376 = vmatpush1.msra.mxu0 0.0
        %377 = vmatprep.subr.mxu0 0.0
        %378 = vmatpush1.msra.mxu0 0.0
        %379 = vmatprep.subr.mxu0 0.0
        %380 = vmatpush1.msra.mxu0 0.0
        %381 = vmatprep.subr.mxu0 0.0
        %382 = vmatpush1.msra.mxu0 0.0
        %383 = vmatprep.mubr.f32.mxu0 0.0
        %384 = vmatmul.mubr.f32.gmra.mrb[0].mxu0 %v191
        %v385 = vpop.f32.mrb[0].mxu0
        %v386 = vadd.f32 %v311, %v385
        %v387 = vpop.f32.mrb[0].mxu0
        %388 = vmatprep.mubr.f32.mxu0 0.0
        %389 = vmatmul.mubr.f32.gmra.mrb[0].mxu0 %v193
        %v390 = vpop.f32.mrb[0].mxu0
        %v391 = vadd.f32 %v316, %v390
        %v392 = vpop.f32.mrb[0].mxu0
        %393 = vdwg.mxu0
        %394 = vst [vmem:[%s165] sm:$0xff] %v386
        %395 = vst [vmem:[%s165 + $0x8] sm:$0xff] %v391
        %s396 = sand.u32 %s86, 1
        %s397 = scalar_lea.sflag [#allocation4], %s396
        %s398 = sand.u32 %s86, 1
        %s399 = smul.addr %s398, 16
        %s400 = scalar_lea.vmem [#allocation5], %s399
        // Predicated region
        $region33: #{tpu_custom_call.1} parent=27 // pred_check
          %p401 = pneg %p96
        $region34: #{tpu_custom_call.1} parent=27 // pred_check_branch
          %403 = sbr.rel (%p401) target = $region36
        $region35: #{tpu_custom_call.1} parent=27 // pred_region
          %s404 = smul.u32 2, %s22
          %s406 = ssub.s32 256, 256
          %407 = vsyncadd %s397, %s406
          %s408 = smul.addr %s21, 2
          %s409 = sadd.s32 %s404, %s408
          %s410 = smul.addr %s409, 128
          %s411 = scalar_lea.hbm %s2, %s410
          %s412 = sshll.u32 %s400, 4
          %s413 = int_to_ptr.vmem [resolvable:$true] %s412
          %418 = dma.vmem_to_hbm [thread:$0]  %s413, 256, %s411, %s397, 128, 128, 8
        $region36: #{tpu_custom_call.1} parent=27 // pred_fallthru
          _
      $region28: #{tpu_custom_call.1} parent=5 // pred_fallthru
        _
      %p419 = scmp.le.s32.totalorder 2, %s12
      // Predicated region
      $region37: #{tpu_custom_call.1} parent=5 // pred_check
        %p420 = pneg %p419
      $region38: #{tpu_custom_call.1} parent=5 // pred_check_branch
        %422 = sbr.rel (%p420) target = $region40
      $region39: #{tpu_custom_call.1} parent=5 // pred_region
        %s423 = ssub.s32 %s12, 2
        // Predicated region
        $region41: #{tpu_custom_call.1} parent=39 // pred_check
          %p424 = pneg %p102
        $region42: #{tpu_custom_call.1} parent=39 // pred_check_branch
          %426 = sbr.rel (%p424) target = $region44
        $region43: #{tpu_custom_call.1} parent=39 // pred_region
          %s427 = sand.u32 %s87, 1
          %s428 = scalar_lea.sflag [#allocation4], %s427
          %s429 = sand.u32 %s87, 1
          %s430 = smul.addr %s429, 16
          %s431 = scalar_lea.vmem [#allocation5], %s430
          %432 = dma.done %s428, 256
        $region44: #{tpu_custom_call.1} parent=39 // pred_fallthru
          _
      $region40: #{tpu_custom_call.1} parent=5 // pred_fallthru
        _
    $region6: #{tpu_custom_call.1} parent=1 // loop_footer
      %s16 = sadd.s32 1, %s12
    $region7: #{tpu_custom_call.1} parent=1 // loop_footer_branch
      %11 = sbr.rel target = $region3
    $region8: #{tpu_custom_call.1} parent=1 // loop_exit
      _
    %433 = vsyncpa [#allocation3], 1
    %s434 = scalar_lea.sflag [#allocation3], 1
    %435 = vsyncpa %s434, 1
    %436 = vsyncpa [#allocation4], 1
    %s437 = scalar_lea.sflag [#allocation4], 1
    %438 = vsyncpa %s437, 1

</llo_original>
